<compile_context>
chip_gen: v5e
topology: v5e:2x2
jax: 0.10.0
libtpu: 0.0.40
codegen_flags: <defaults>
</compile_context>

<pallas_src>
import math

import jax
import jax.numpy as jnp
from jax import lax
from jax.experimental import pallas as pl
from jax.experimental.pallas import tpu as pltpu


_CHUNK = 32  # rows per issue/drain chunk in the HBM-gather path


def _round_up(x, m):
    return (x + m - 1) // m * m


# ----------------------------------------------------------------------------
# Fast path: table resident in VMEM, per-row vector-load gather.
# ----------------------------------------------------------------------------
def _embedding_vmem_kernel(idx_ref, table_ref, out_ref):
    """idx_ref: (N_pad,) int32 SMEM; table_ref: (num, D) VMEM (grid-constant);
    out_ref: (TN, D) VMEM output block."""
    tn = out_ref.shape[0]
    base = pl.multiple_of(pl.program_id(0) * tn, tn)

    def body(r, carry):
        row = idx_ref[base + r]
        out_ref[pl.ds(r, 1), :] = table_ref[pl.ds(row, 1), :]
        return carry

    lax.fori_loop(0, tn, body, 0, unroll=8)


# ----------------------------------------------------------------------------
# Fallback: table in HBM, chunked DMA row gather with aggregate waits.
# ----------------------------------------------------------------------------
def _embedding_hbm_kernel(idx_ref, table_ref, out_ref, sem):
    """idx_ref: (N_pad,) int32 SMEM; table_ref: (num, D) HBM (pl.ANY);
    out_ref: (TN, D) VMEM output block; sem: scalar DMA semaphore."""
    tn = out_ref.shape[0]
    base = pl.multiple_of(pl.program_id(0) * tn, tn)
    n_chunks = tn // _CHUNK

    def issue_chunk(c):
        start = c * _CHUNK

        def body(r, carry):
            row = idx_ref[base + start + r]
            pltpu.make_async_copy(
                table_ref.at[pl.ds(row, 1), :],
                out_ref.at[pl.ds(start + r, 1), :],
                sem,
            ).start()
            return carry

        # Unrolled: descriptor issue is scalar-slot bound; remove loop overhead.
        lax.fori_loop(0, _CHUNK, body, 0, unroll=True)

    def wait_chunk():
        # DMA semaphores count bytes, and every row copy is the same size, so
        # one wait descriptor sized _CHUNK rows drains _CHUNK completed copies.
        # (src/dst here are only used for the byte count, never started.)
        pltpu.make_async_copy(
            out_ref.at[pl.ds(0, _CHUNK), :],
            out_ref.at[pl.ds(0, _CHUNK), :],
            sem,
        ).wait()

    # Software pipeline inside the step: issue chunk k+1 while draining chunk k.
    issue_chunk(0)
    if n_chunks > 1:
        @pl.loop(0, n_chunks - 1)
        def _(c):
            issue_chunk(c + 1)
            wait_chunk()
    wait_chunk()


# ----------------------------------------------------------------------------
# Wrapper
# ----------------------------------------------------------------------------
def embedding_forward(idx, table, *, block_rows=512,
                      vmem_table_budget=16 << 20, force_hbm=False):
    """Pallas equivalent of EmbeddingModel.forward.

    idx:   integer array of any shape
    table: (num, D) embedding table
    returns idx.shape + (D,) array with table.dtype
    """
    orig_shape = idx.shape
    num, D = table.shape
    N = math.prod(orig_shape) if orig_shape else 1

    itemsize = jnp.dtype(table.dtype).itemsize
    row_bytes = D * itemsize
    table_bytes = num * row_bytes

    use_vmem_table = (not force_hbm) and (table_bytes <= vmem_table_budget)

    # --- token block size ---------------------------------------------------
    # Cap the double-buffered output block at ~8 MiB (safe on v7x's 64 MiB VMEM,
    # comfortable on v5e/v6e's 128 MiB).
    out_block_budget = 8 << 20
    tn_cap = max(8, (out_block_budget // (2 * row_bytes)) // 8 * 8)
    tn = max(8, min(block_rows, tn_cap))
    # Guarantee >= 2 grid steps when there is enough work so the "parallel"
    # token axis actually splits across v7x's two TensorCores.
    if N >= 16:
        tn = min(tn, _round_up(-(-N // 2), 8))
    align = 8 if use_vmem_table else _CHUNK
    tn = max(align, _round_up(tn, align))
    n_pad = _round_up(N, tn)

    # Flatten, clamp out-of-range indices (gather would otherwise read
    # arbitrary rows; torch.nn.Embedding raises), pad to the block size.
    # TODO(synk): torch raises on out-of-range indices; here they are clamped.
    idx_flat = jnp.clip(idx.reshape(-1).astype(jnp.int32), 0, num - 1)
    if n_pad != N:
        idx_flat = jnp.pad(idx_flat, (0, n_pad - N))

    out_block_bytes = tn * row_bytes
    if use_vmem_table:
        vmem_needed = 2 * table_bytes + 2 * out_block_bytes + (2 << 20)
        bytes_accessed = table_bytes + n_pad * row_bytes + 4 * n_pad
        kernel = _embedding_vmem_kernel
        grid_spec = pltpu.PrefetchScalarGridSpec(
            num_scalar_prefetch=1,                         # idx -> SMEM
            grid=(n_pad // tn,),
            # Grid-constant block: the full table is DMA'd into VMEM once and
            # stays resident across all token blocks.
            in_specs=[pl.BlockSpec((num, D), lambda i, idx_ref: (0, 0))],
            out_specs=pl.BlockSpec((tn, D), lambda i, idx_ref: (i, 0)),
        )
    else:
        vmem_needed = 2 * out_block_bytes + (2 << 20)
        bytes_accessed = 2 * n_pad * row_bytes + 4 * n_pad
        kernel = _embedding_hbm_kernel
        grid_spec = pltpu.PrefetchScalarGridSpec(
            num_scalar_prefetch=1,                         # idx -> SMEM
            grid=(n_pad // tn,),
            in_specs=[pl.BlockSpec(memory_space=pl.ANY)],  # table stays in HBM
            out_specs=pl.BlockSpec((tn, D), lambda i, idx_ref: (i, 0)),
            scratch_shapes=[pltpu.SemaphoreType.DMA(())],
        )

    vmem_limit = int(min(max(vmem_needed, 16 << 20), 48 << 20))
    cost = pl.CostEstimate(flops=0, transcendentals=0,
                           bytes_accessed=int(bytes_accessed))

    out = pl.pallas_call(
        kernel,
        out_shape=jax.ShapeDtypeStruct((n_pad, D), table.dtype),
        grid_spec=grid_spec,
        compiler_params=pltpu.CompilerParams(
            dimension_semantics=("parallel",),   # megacore-sharded token axis
            vmem_limit_bytes=vmem_limit,
        ),
        cost_estimate=cost,
    )(idx_flat, table)

    return out[:N].reshape(*orig_shape, D)


if __name__ == "__main__":
    key = jax.random.PRNGKey(0)
    k_tab, k_idx = jax.random.split(key)

    # Module config: EmbeddingModel(num, embedding_dim); idx batch (2, 8).
    num, embedding_dim = 32, 128
    B, S = 2, 8

    # torch.nn.Embedding initializes weights ~ N(0, 1)
    table = jax.random.normal(k_tab, (num, embedding_dim), dtype=jnp.float32)
    idx = jax.random.randint(k_idx, (B, S), 0, num, dtype=jnp.int32)

    ref = jnp.take(table, idx.reshape(-1), axis=0).reshape(B, S, embedding_dim)

    # Fast path: VMEM-resident table gather.
    out = jax.block_until_ready(embedding_forward(idx, table))
    assert out.shape == (B, S, embedding_dim)
    assert out.dtype == jnp.float32
    assert jnp.allclose(out, ref, atol=1e-6)

    # Large-table fallback: HBM table + chunked DMA row gather (forced here to
    # validate the path on a small table).
    out_hbm = jax.block_until_ready(embedding_forward(idx, table, force_hbm=True))
    assert out_hbm.shape == (B, S, embedding_dim)
    assert jnp.allclose(out_hbm, ref, atol=1e-6)

    print("KERNEL_OK")
</pallas_src>

<mosaic_0001>
module attributes {stable_mosaic.version = 11 : i64} {
  func.func @_embedding_vmem_kernel(%arg0: i32, %arg1: memref<16xi32, #tpu.memory_space<smem>>, %arg2: memref<32x128xf32, #tpu.memory_space<vmem>>, %arg3: memref<8x128xf32, #tpu.memory_space<vmem>>) attributes {dimension_semantics = [#tpu.dimension_semantics<parallel>], iteration_bounds = array<i64: 2>, scalar_prefetch = 1 : i64, scratch_operands = 0 : i64, tpu.core_type = #tpu.core_type<tc>, window_params = [{pipeline_mode = #tpu.pipeline_mode<synchronous>, transform_indices = @transform_0, window_bounds = array<i64: 32, 128>}, {transform_indices = @transform_1, window_bounds = array<i64: 8, 128>}]} {
    %c8_i32 = arith.constant 8 : i32
    %0 = arith.muli %arg0, %c8_i32 : i32
    %1 = tpu.assume_multiple %0, 8 : i32
    %c0_i32 = arith.constant 0 : i32
    %2 = arith.addi %1, %c0_i32 : i32
    %3 = arith.index_cast %2 : i32 to index
    %4 = memref.load %arg1[%3] : memref<16xi32, #tpu.memory_space<smem>>
    %5 = arith.index_cast %4 : i32 to index
    %c0 = arith.constant 0 : index
    %6 = vector.load %arg2[%5, %c0] : memref<32x128xf32, #tpu.memory_space<vmem>>, vector<1x128xf32>
    %7 = arith.index_cast %c0_i32 : i32 to index
    %c0_0 = arith.constant 0 : index
    %8 = vector.load %arg3[%7, %c0_0] : memref<8x128xf32, #tpu.memory_space<vmem>>, vector<1x128xf32>
    tpu.vector_store %arg3[%7, %c0_0], %6 {strides = array<i32>} : memref<8x128xf32, #tpu.memory_space<vmem>>, vector<1x128xf32>,
    %c1_i32 = arith.constant 1 : i32
    %9 = arith.addi %1, %c1_i32 : i32
    %10 = arith.index_cast %9 : i32 to index
    %11 = memref.load %arg1[%10] : memref<16xi32, #tpu.memory_space<smem>>
    %12 = arith.index_cast %11 : i32 to index
    %c0_1 = arith.constant 0 : index
    %13 = vector.load %arg2[%12, %c0_1] : memref<32x128xf32, #tpu.memory_space<vmem>>, vector<1x128xf32>
    %14 = arith.index_cast %c1_i32 : i32 to index
    %c0_2 = arith.constant 0 : index
    %15 = vector.load %arg3[%14, %c0_2] : memref<8x128xf32, #tpu.memory_space<vmem>>, vector<1x128xf32>
    tpu.vector_store %arg3[%14, %c0_2], %13 {strides = array<i32>} : memref<8x128xf32, #tpu.memory_space<vmem>>, vector<1x128xf32>,
    %c2_i32 = arith.constant 2 : i32
    %16 = arith.addi %1, %c2_i32 : i32
    %17 = arith.index_cast %16 : i32 to index
    %18 = memref.load %arg1[%17] : memref<16xi32, #tpu.memory_space<smem>>
    %19 = arith.index_cast %18 : i32 to index
    %c0_3 = arith.constant 0 : index
    %20 = vector.load %arg2[%19, %c0_3] : memref<32x128xf32, #tpu.memory_space<vmem>>, vector<1x128xf32>
    %21 = arith.index_cast %c2_i32 : i32 to index
    %c0_4 = arith.constant 0 : index
    %22 = vector.load %arg3[%21, %c0_4] : memref<8x128xf32, #tpu.memory_space<vmem>>, vector<1x128xf32>
    tpu.vector_store %arg3[%21, %c0_4], %20 {strides = array<i32>} : memref<8x128xf32, #tpu.memory_space<vmem>>, vector<1x128xf32>,
    %c3_i32 = arith.constant 3 : i32
    %23 = arith.addi %1, %c3_i32 : i32
    %24 = arith.index_cast %23 : i32 to index
    %25 = memref.load %arg1[%24] : memref<16xi32, #tpu.memory_space<smem>>
    %26 = arith.index_cast %25 : i32 to index
    %c0_5 = arith.constant 0 : index
    %27 = vector.load %arg2[%26, %c0_5] : memref<32x128xf32, #tpu.memory_space<vmem>>, vector<1x128xf32>
    %28 = arith.index_cast %c3_i32 : i32 to index
    %c0_6 = arith.constant 0 : index
    %29 = vector.load %arg3[%28, %c0_6] : memref<8x128xf32, #tpu.memory_space<vmem>>, vector<1x128xf32>
    tpu.vector_store %arg3[%28, %c0_6], %27 {strides = array<i32>} : memref<8x128xf32, #tpu.memory_space<vmem>>, vector<1x128xf32>,
    %c4_i32 = arith.constant 4 : i32
    %30 = arith.addi %1, %c4_i32 : i32
    %31 = arith.index_cast %30 : i32 to index
    %32 = memref.load %arg1[%31] : memref<16xi32, #tpu.memory_space<smem>>
    %33 = arith.index_cast %32 : i32 to index
    %c0_7 = arith.constant 0 : index
    %34 = vector.load %arg2[%33, %c0_7] : memref<32x128xf32, #tpu.memory_space<vmem>>, vector<1x128xf32>
    %35 = arith.index_cast %c4_i32 : i32 to index
    %c0_8 = arith.constant 0 : index
    %36 = vector.load %arg3[%35, %c0_8] : memref<8x128xf32, #tpu.memory_space<vmem>>, vector<1x128xf32>
    tpu.vector_store %arg3[%35, %c0_8], %34 {strides = array<i32>} : memref<8x128xf32, #tpu.memory_space<vmem>>, vector<1x128xf32>,
    %c5_i32 = arith.constant 5 : i32
    %37 = arith.addi %1, %c5_i32 : i32
    %38 = arith.index_cast %37 : i32 to index
    %39 = memref.load %arg1[%38] : memref<16xi32, #tpu.memory_space<smem>>
    %40 = arith.index_cast %39 : i32 to index
    %c0_9 = arith.constant 0 : index
    %41 = vector.load %arg2[%40, %c0_9] : memref<32x128xf32, #tpu.memory_space<vmem>>, vector<1x128xf32>
    %42 = arith.index_cast %c5_i32 : i32 to index
    %c0_10 = arith.constant 0 : index
    %43 = vector.load %arg3[%42, %c0_10] : memref<8x128xf32, #tpu.memory_space<vmem>>, vector<1x128xf32>
    tpu.vector_store %arg3[%42, %c0_10], %41 {strides = array<i32>} : memref<8x128xf32, #tpu.memory_space<vmem>>, vector<1x128xf32>,
    %c6_i32 = arith.constant 6 : i32
    %44 = arith.addi %1, %c6_i32 : i32
    %45 = arith.index_cast %44 : i32 to index
    %46 = memref.load %arg1[%45] : memref<16xi32, #tpu.memory_space<smem>>
    %47 = arith.index_cast %46 : i32 to index
    %c0_11 = arith.constant 0 : index
    %48 = vector.load %arg2[%47, %c0_11] : memref<32x128xf32, #tpu.memory_space<vmem>>, vector<1x128xf32>
    %49 = arith.index_cast %c6_i32 : i32 to index
    %c0_12 = arith.constant 0 : index
    %50 = vector.load %arg3[%49, %c0_12] : memref<8x128xf32, #tpu.memory_space<vmem>>, vector<1x128xf32>
    tpu.vector_store %arg3[%49, %c0_12], %48 {strides = array<i32>} : memref<8x128xf32, #tpu.memory_space<vmem>>, vector<1x128xf32>,
    %c7_i32 = arith.constant 7 : i32
    %51 = arith.addi %1, %c7_i32 : i32
    %52 = arith.index_cast %51 : i32 to index
    %53 = memref.load %arg1[%52] : memref<16xi32, #tpu.memory_space<smem>>
    %54 = arith.index_cast %53 : i32 to index
    %c0_13 = arith.constant 0 : index
    %55 = vector.load %arg2[%54, %c0_13] : memref<32x128xf32, #tpu.memory_space<vmem>>, vector<1x128xf32>
    %56 = arith.index_cast %c7_i32 : i32 to index
    %c0_14 = arith.constant 0 : index
    %57 = vector.load %arg3[%56, %c0_14] : memref<8x128xf32, #tpu.memory_space<vmem>>, vector<1x128xf32>
    tpu.vector_store %arg3[%56, %c0_14], %55 {strides = array<i32>} : memref<8x128xf32, #tpu.memory_space<vmem>>, vector<1x128xf32>,
    %c8_i32_15 = arith.constant 8 : i32
    return
  }
  func.func @transform_0(%arg0: i32, %arg1: memref<16xi32, #tpu.memory_space<smem>>) -> (i32, i32) {
    %c0_i32 = arith.constant 0 : i32
    %c0_i32_0 = arith.constant 0 : i32
    %c0_i32_1 = arith.constant 0 : i32
    return %c0_i32, %c0_i32_0 : i32, i32
  }
  func.func @transform_1(%arg0: i32, %arg1: memref<16xi32, #tpu.memory_space<smem>>) -> (i32, i32) {
    %c0_i32 = arith.constant 0 : i32
    %c0_i32_0 = arith.constant 0 : i32
    return %arg0, %c0_i32 : i32, i32
  }
}

</mosaic_0001>

<llo_original>
// kernel: tpu_custom_call.1
$region0: #{tpu_custom_call.1}
  #allocation0 [shape = 'u32[]', space=smem, size = 0x4, offset = 0x4, fixed_abs, tag = 'smem constant byte address 0x4 - core index']
  #allocation1 [shape = 'u32[72,128]{1,0:T(1,128)}', space=vmem, size = 0x9000, scoped, tag = 'internal scratch']
  #allocation2 [shape = 's32[1]{0}', space=sflag, size = 0x4, scoped, tag = 'scoped memory for tpu_custom_call.1']
  #allocation3 [shape = 'u8[512]{0}', space=smem, size = 0x200, scoped, tag = 'prefetched SMEM operand 0']
  %s0 = inlined_call_operand.hbm [shape: s32[16], index: 0, kind: input, shape index: {}]
  %s1 = inlined_call_operand.hbm [shape: f32[32,128], index: 1, kind: input, shape index: {}]
  %s2 = inlined_call_operand.hbm [shape: f32[16,128], index: 2, kind: output, shape index: {}]
  %s3 = sld [smem:[#allocation0]]
  $region41: #{tpu_custom_call.1} parent=0
    _
  %s5 = ssub.s32 1, %s3
  %s6 = scalar_select 0, %s5, %s3
  %s8 = sshll.u32 %s0, 4
  %s9 = int_to_ptr.hbm [resolvable:$true] %s8
  %11 = dma.hbm_to_smem %s9, 16, [#allocation3], [#allocation2]
  %13 = dma.done [#allocation2], 16
  %14 = sfence
  $region1: #{tpu_custom_call.1} parent=0
    #allocation4 [shape = 'u8[16384]{0}', space=vmem, size = 0x4000, scoped, tag = 'input window, operand 1, single buffered']
    #allocation5 [shape = 's32[2]{0}', space=sflag, size = 0x8, scoped, tag = 'scoped memory for tpu_custom_call.1']
    #allocation6 [shape = 's32[2]{0}', space=sflag, size = 0x8, scoped, tag = 'scoped memory for tpu_custom_call.1']
    #allocation7 [shape = 'u8[8192]{0}', space=vmem, size = 0x2000, scoped, tag = 'output window, operand 0']
    %15 = vsyncpa [#allocation5], 0
    %16 = vsyncpa [#allocation6], 0
    %s17 = scalar_lea.sflag [#allocation6], 1
    %18 = vsyncpa %s17, 0
    loop: start=0, step=1, limit=4
    $region2: #{tpu_custom_call.1} parent=1 // loop_pre_header
      _
    $region3: #{tpu_custom_call.1} parent=1 // loop_header
      %s20 = sphi 0, %s24
      %p21 = scmp.ge.s32.totalorder %s20, 4
      %s28 = sphi 0, %s28
      %s30 = sphi 0, %s28
      %s31 = sphi 0, %s30
      %s45 = sphi 0, %s31
      %s51 = sphi 0, %s53
      %s54 = sphi 0, %s51
      %s55 = sphi 0, %s54
      %s71 = sphi 0, %s55
    $region4: #{tpu_custom_call.1} parent=1 // loop_header_branch
      %23 = sbr.rel (%p21) target = $region8
    $region5: #{tpu_custom_call.1} parent=1 // loop_body
      %s25 = ssub.s32 %s20, 1
      %s26 = ssub.s32 %s20, 2
      %s27 = sadd.s32 %s20, 1
      %s29 = sadd.s32 %s28, 1
      %p32 = scmp.eq.s32.totalorder %s20, 1
      %p33 = scmp.ne.s32.totalorder %s28, %s30
      %p34 = scmp.eq.s32.totalorder %s20, 0
      %p35 = por %p33, %p34
      %p36 = scmp.ne.s32.totalorder %s28, %s30
      %p37 = scmp.eq.s32.totalorder %s25, 1
      %p38 = por %p36, %p37
      %p39 = scmp.ne.s32.totalorder %s30, %s31
      %p40 = scmp.eq.s32.totalorder %s25, 0
      %p41 = por %p39, %p40
      %p42 = scmp.ne.s32.totalorder %s30, %s31
      %p43 = scmp.eq.s32.totalorder %s26, 1
      %p44 = por %p42, %p43
      %p46 = scmp.ne.s32.totalorder %s31, %s45
      %p47 = scmp.eq.s32.totalorder %s26, 0
      %p48 = por %p46, %p47
      %s49 = ssub.s32 %s20, %s27
      %p50 = scmp.eq.s32.totalorder %s49, 0
      %s52 = sadd.s32 %s51, 1
      %s53 = scalar_select %p50, %s51, %s52
      %p56 = pneg %p50
      %p57 = scmp.eq.s32.totalorder %s20, 1
      %p58 = por %p56, %p57
      %p59 = scmp.ne.s32.totalorder %s51, %s54
      %p60 = scmp.eq.s32.totalorder %s20, 0
      %p61 = por %p59, %p60
      %p62 = scmp.ne.s32.totalorder %s51, %s54
      %p63 = scmp.eq.s32.totalorder %s25, 1
      %p64 = por %p62, %p63
      %p65 = scmp.ne.s32.totalorder %s54, %s55
      %p66 = scmp.eq.s32.totalorder %s25, 0
      %p67 = por %p65, %p66
      %p68 = scmp.ne.s32.totalorder %s54, %s55
      %p69 = scmp.eq.s32.totalorder %s26, 1
      %p70 = por %p68, %p69
      %p72 = scmp.ne.s32.totalorder %s55, %s71
      %p73 = scmp.eq.s32.totalorder %s26, 0
      %p74 = por %p72, %p73
      %p75 = scmp.le.s32.totalorder 1, %s20
      %p76 = scmp.lt.s32.totalorder %s20, 3
      %p77 = pnand %p75, %p76
      %p78 = pneg %p77
      // Predicated region
      $region9: #{tpu_custom_call.1} parent=5 // pred_check
        _
      $region10: #{tpu_custom_call.1} parent=5 // pred_check_branch
        %80 = sbr.rel (%p77) target = $region12
      $region11: #{tpu_custom_call.1} parent=5 // pred_region
        %s81 = ssub.s32 %s20, 1
        // Predicated region
        $region13: #{tpu_custom_call.1} parent=11 // pred_check
          %p82 = pneg %p41
        $region14: #{tpu_custom_call.1} parent=11 // pred_check_branch
          %84 = sbr.rel (%p82) target = $region16
        $region15: #{tpu_custom_call.1} parent=11 // pred_region
          %86 = vsyncadd [#allocation5], 0
          %s87 = sshll.u32 %s1, 4
          %s88 = int_to_ptr.hbm [resolvable:$true] %s87
          %s89 = sshll.u32 [#allocation4], 4
          %s90 = int_to_ptr.vmem [resolvable:$true] %s89
          %95 = dma.hbm_to_vmem [thread:$0]  %s88, 512, %s90, [#allocation5], 128, 128, 8
        $region16: #{tpu_custom_call.1} parent=11 // pred_fallthru
          _
      $region12: #{tpu_custom_call.1} parent=5 // pred_fallthru
        _
      %p96 = scmp.lt.s32.totalorder %s20, 2
      // Predicated region
      $region17: #{tpu_custom_call.1} parent=5 // pred_check
        %p97 = pneg %p96
      $region18: #{tpu_custom_call.1} parent=5 // pred_check_branch
        %99 = sbr.rel (%p97) target = $region20
      $region19: #{tpu_custom_call.1} parent=5 // pred_region
        _
      $region20: #{tpu_custom_call.1} parent=5 // pred_fallthru
        _
      %p100 = scmp.le.s32.totalorder 1, %s20
      %p101 = scmp.lt.s32.totalorder %s20, 3
      %p102 = pnand %p100, %p101
      %p103 = pneg %p102
      // Predicated region
      $region21: #{tpu_custom_call.1} parent=5 // pred_check
        _
      $region22: #{tpu_custom_call.1} parent=5 // pred_check_branch
        %105 = sbr.rel (%p102) target = $region24
      $region23: #{tpu_custom_call.1} parent=5 // pred_region
        %s106 = ssub.s32 %s20, 1
        // Predicated region
        $region25: #{tpu_custom_call.1} parent=23 // pred_check
          %p107 = pneg %p41
        $region26: #{tpu_custom_call.1} parent=23 // pred_check_branch
          %109 = sbr.rel (%p107) target = $region28
        $region27: #{tpu_custom_call.1} parent=23 // pred_region
          %111 = dma.done [#allocation5], 512
        $region28: #{tpu_custom_call.1} parent=23 // pred_fallthru
          _
        %p112 = pneg %p41
        %p113 = pneg %p38
        %p114 = pneg %p67
        %p115 = pneg %p64
        %s116 = sand.u32 %s54, 1
        %s117 = scalar_lea.sflag [#allocation6], %s116
        %s118 = sand.u32 %s54, 1
        %s119 = smul.addr %s118, 8
        %s120 = scalar_lea.vmem [#allocation7], %s119
        %s121 = smul.u32 %s25, 8
        %s122 = sld [smem:[#allocation3 + %s121]]
        %s123 = scalar_lea.vmem [#allocation4], %s122
        %v124 = vld [vmem:[%s123] sm:$0x1]
        %125 = vst [vmem:[%s120] sm:$0x1] %v124
        %s126 = sadd.s32 %s121, 1
        %s127 = sld [smem:[#allocation3 + %s126]]
        %s128 = scalar_lea.vmem [#allocation4], %s127
        %v129 = vld [vmem:[%s128] sm:$0x1]
        %130 = vst [vmem:[%s120 + $0x1] sm:$0x1] %v129
        %s131 = sadd.s32 %s121, 2
        %s132 = sld [smem:[#allocation3 + %s131]]
        %s133 = scalar_lea.vmem [#allocation4], %s132
        %v134 = vld [vmem:[%s133] sm:$0x1]
        %135 = vst [vmem:[%s120 + $0x2] sm:$0x1] %v134
        %s136 = sadd.s32 %s121, 3
        %s137 = sld [smem:[#allocation3 + %s136]]
        %s138 = scalar_lea.vmem [#allocation4], %s137
        %v139 = vld [vmem:[%s138] sm:$0x1]
        %140 = vst [vmem:[%s120 + $0x3] sm:$0x1] %v139
        %s141 = sadd.s32 %s121, 4
        %s142 = sld [smem:[#allocation3 + %s141]]
        %s143 = scalar_lea.vmem [#allocation4], %s142
        %v144 = vld [vmem:[%s143] sm:$0x1]
        %145 = vst [vmem:[%s120 + $0x4] sm:$0x1] %v144
        %s146 = sadd.s32 %s121, 5
        %s147 = sld [smem:[#allocation3 + %s146]]
        %s148 = scalar_lea.vmem [#allocation4], %s147
        %v149 = vld [vmem:[%s148] sm:$0x1]
        %150 = vst [vmem:[%s120 + $0x5] sm:$0x1] %v149
        %s151 = sadd.s32 %s121, 6
        %s152 = sld [smem:[#allocation3 + %s151]]
        %s153 = scalar_lea.vmem [#allocation4], %s152
        %v154 = vld [vmem:[%s153] sm:$0x1]
        %155 = vst [vmem:[%s120 + $0x6] sm:$0x1] %v154
        %s156 = sadd.s32 %s121, 7
        %s157 = sld [smem:[#allocation3 + %s156]]
        %s158 = scalar_lea.vmem [#allocation4], %s157
        %v159 = vld [vmem:[%s158] sm:$0x1]
        %160 = vst [vmem:[%s120 + $0x7] sm:$0x1] %v159
        %s161 = sand.u32 %s54, 1
        %s162 = scalar_lea.sflag [#allocation6], %s161
        %s163 = sand.u32 %s54, 1
        %s164 = smul.addr %s163, 8
        %s165 = scalar_lea.vmem [#allocation7], %s164
        // Predicated region
        $region29: #{tpu_custom_call.1} parent=23 // pred_check
          %p166 = pneg %p64
        $region30: #{tpu_custom_call.1} parent=23 // pred_check_branch
          %168 = sbr.rel (%p166) target = $region32
        $region31: #{tpu_custom_call.1} parent=23 // pred_region
          %170 = vsyncadd %s162, 0
          %s171 = smul.addr %s25, 8
          %s172 = scalar_lea.hbm %s2, %s171
          %s174 = sshll.u32 %s165, 4
          %s175 = int_to_ptr.vmem [resolvable:$true] %s174
          %s176 = sshll.u32 %s172, 4
          %s177 = int_to_ptr.hbm [resolvable:$true] %s176
          %179 = dma.vmem_to_hbm [thread:$0]  %s175, 128, %s177, %s162
        $region32: #{tpu_custom_call.1} parent=23 // pred_fallthru
          _
      $region24: #{tpu_custom_call.1} parent=5 // pred_fallthru
        _
      %p180 = scmp.le.s32.totalorder 2, %s20
      // Predicated region
      $region33: #{tpu_custom_call.1} parent=5 // pred_check
        %p181 = pneg %p180
      $region34: #{tpu_custom_call.1} parent=5 // pred_check_branch
        %183 = sbr.rel (%p181) target = $region36
      $region35: #{tpu_custom_call.1} parent=5 // pred_region
        %s184 = ssub.s32 %s20, 2
        // Predicated region
        $region37: #{tpu_custom_call.1} parent=35 // pred_check
          %p185 = pneg %p70
        $region38: #{tpu_custom_call.1} parent=35 // pred_check_branch
          %187 = sbr.rel (%p185) target = $region40
        $region39: #{tpu_custom_call.1} parent=35 // pred_region
          %s188 = sand.u32 %s55, 1
          %s189 = scalar_lea.sflag [#allocation6], %s188
          %s190 = sand.u32 %s55, 1
          %s191 = smul.addr %s190, 8
          %s192 = scalar_lea.vmem [#allocation7], %s191
          %194 = dma.done %s189, 128
        $region40: #{tpu_custom_call.1} parent=35 // pred_fallthru
          _
      $region36: #{tpu_custom_call.1} parent=5 // pred_fallthru
        _
    $region6: #{tpu_custom_call.1} parent=1 // loop_footer
      %s24 = sadd.s32 1, %s20
    $region7: #{tpu_custom_call.1} parent=1 // loop_footer_branch
      %19 = sbr.rel target = $region3
    $region8: #{tpu_custom_call.1} parent=1 // loop_exit
      _
    %195 = vsyncpa [#allocation5], 1
    %s196 = scalar_lea.sflag [#allocation5], 1
    %197 = vsyncpa %s196, 1
    %198 = vsyncpa [#allocation6], 1
    %s199 = scalar_lea.sflag [#allocation6], 1
    %200 = vsyncpa %s199, 1

</llo_original>
